<compile_context>
chip_gen: v7x
topology: tpu7x:2x2x1
jax: 0.10.0
libtpu: 0.0.40
codegen_flags: <defaults>
</compile_context>

<pallas_src>
import jax
import jax.numpy as jnp
from jax.experimental import pallas as pl
from jax.experimental.pallas import tpu as pltpu

K = 3  # autoregressive conv kernel size

# Nonzero taps of the 3x3 'A' mask (strictly-before-center in raster order),
# expressed as (dy, dx) input offsets relative to the output position.
_NZ_TAPS = ((-1, -1), (-1, 0), (-1, 1), (0, -1))
_T = len(_NZ_TAPS)


def _make_kernel(H, W, Bt, C, C_out):
    HW = H * W

    def kernel(xl_ref, xu_ref, w_ref, b_ref, zl_ref, zu_ref):
        # xl_ref / xu_ref : (Bt, C, HW)    f32, lane axis = flattened H*W
        # w_ref           : (T, C_out, C)  f32, per-tap conv weights
        # b_ref           : (C_out, 1)     f32, conv bias
        # zl_ref / zu_ref : (Bt, C, HW)    f32
        xl = xl_ref[...]

        # Position metadata, hoisted (computed once per grid step).
        lane = jax.lax.broadcasted_iota(jnp.int32, (1, 1, HW), 2)
        col = lane % W
        row_ok = lane >= W            # a previous image row exists (dy = -1)
        left_ok = col >= 1            # col - 1 exists (dx = -1)
        right_ok = col < (W - 1)      # col + 1 exists (dx = +1)
        tap_valid = {
            (-1, -1): jnp.logical_and(row_ok, left_ok),
            (-1, 0): row_ok,
            (-1, 1): jnp.logical_and(row_ok, right_ok),
            (0, -1): left_ok,
        }

        w_all = w_ref[...]            # (T, C_out, C) f32

        # Masked 'A'-conv accumulated as one small MXU matmul per nonzero tap
        # (no materialized im2col slab).  bf16 operands, f32 accumulation.
        acc = None
        for t, (dy, dx) in enumerate(_NZ_TAPS):
            k = -(dy * W + dx)        # 17, 16, 15, 1 for W=16 — all > 0
            # shifted[i] = xl[i - k]; lanes whose source wraps across the row
            # or image boundary are invalid and get the conv's zero padding.
            shifted = pltpu.roll(xl, shift=k, axis=2)
            shifted = jnp.where(tap_valid[(dy, dx)], shifted, 0.0)
            shifted = shifted.astype(jnp.bfloat16)
            w_t = jnp.broadcast_to(
                w_all[t][None], (Bt, C_out, C)).astype(jnp.bfloat16)
            d = jax.lax.dot_general(
                w_t, shifted,
                dimension_numbers=(((2,), (1,)), ((0,), (0,))),
                preferred_element_type=jnp.float32)      # (Bt, C_out, HW)
            acc = d if acc is None else acc + d
        params = acc + b_ref[...][None]                  # bias broadcast, f32

        # Elementwise affine subset transform on lane-dense slabs.
        shift = params[:, :C, :]
        scale = jax.nn.sigmoid(params[:, C:, :] + 2.0)
        zl_ref[...] = (scale * xl + shift).astype(zl_ref.dtype)
        zu_ref[...] = (scale * xu_ref[...] + shift).astype(zu_ref.dtype)

    return kernel


def _vmem_capacity_bytes():
    try:
        return int(pltpu.get_tpu_info().vmem_capacity_bytes)
    except Exception:
        return 64 * 1024 * 1024       # conservative default (v7x per-core)


def _looks_multi_tensorcore():
    # v7x exposes 2 TensorCores per chip; "parallel" grid axes get sharded
    # across them, so we keep >=2 grid steps there (and only there).
    try:
        kind = jax.devices()[0].device_kind.lower()
    except Exception:
        return False
    return "7" in kind


def _tile_plan(B, C, HW):
    """Returns (Bt images per grid step, vmem_limit_bytes)."""
    cap = _vmem_capacity_bytes()
    # Scoped-VMEM limit well above the default, with ~25% headroom to
    # physical capacity (96 MiB on v5e/v6e, 48 MiB on v7x).
    vmem_limit = min(cap - cap // 4, 96 * 1024 * 1024)

    # Honest per-image VMEM footprint (f32, C=4 rows sublane-padded to 8):
    #   4 I/O blocks (xl, xu, zl, zu), double-buffered by the pipeline -> 8 slabs
    #   live temporaries (rolled tap, masked/bf16 copy, dot result,
    #   params accumulator, scale/shift)                              -> ~6 slabs
    slab = 8 * HW * 4
    per_image = 14 * slab
    # Target at most half of the requested limit; rest is compiler headroom.
    budget = vmem_limit // 2
    bt = max(1, budget // per_image)

    if _looks_multi_tensorcore() and B > 1:
        half = pl.cdiv(B, 2)
        # Keep >=2 grid steps so both TensorCores get a shard, but never
        # shrink a step below ~2 MiB of HBM I/O.
        step_io_per_image = 4 * C * HW * 4   # xl+xu read, zl+zu written
        if half * step_io_per_image >= (2 << 20):
            bt = min(bt, half)

    return min(bt, B), int(vmem_limit)


@jax.jit
def autoregressive_subset_transform_2d(x_lower, x_upper, conv_weight, conv_bias):
    """x_lower, x_upper: (B, C, H, W) float32 (NCHW, PyTorch convention).

    conv_weight: (2C, C, K, K)   conv_bias: (2C,)
    Returns (z_lower, z_upper), each (B, C, H, W).
    """
    B, C, H, W = x_lower.shape
    C_out, C_in, KH, KW = conv_weight.shape
    if C_out != 2 * C or C_in != C or KH != K or KW != K:
        raise ValueError(
            "autoregressive_net must be a 3x3 conv with output_dim_multiplier"
            f" == 2; got weight shape {conv_weight.shape} for C={C}")
    HW = H * W

    # NCHW -> (B, C, H*W): pure reshape (no transpose, no extra HBM traffic).
    xl = x_lower.reshape(B, C, HW).astype(jnp.float32)
    xu = x_upper.reshape(B, C, HW).astype(jnp.float32)

    # Per-tap weight slices of the 'A' mask: (T, C_out, C), f32.
    w_taps = jnp.stack(
        [conv_weight[:, :, dy + 1, dx + 1] for dy, dx in _NZ_TAPS],
        axis=0).astype(jnp.float32)
    b_col = conv_bias.astype(jnp.float32).reshape(C_out, 1)

    Bt, vmem_limit = _tile_plan(B, C, HW)
    steps = pl.cdiv(B, Bt)
    Bp = steps * Bt
    if Bp != B:
        # cdiv grid + zero-padded batch tail (padded outputs sliced off) keeps
        # the per-step tile roofline-sized for awkward B.
        pad = ((0, Bp - B), (0, 0), (0, 0))
        xl = jnp.pad(xl, pad)
        xu = jnp.pad(xu, pad)

    kernel = _make_kernel(H, W, Bt, C, C_out)
    out_sds = jax.ShapeDtypeStruct((Bp, C, HW), jnp.float32)
    zl, zu = pl.pallas_call(
        kernel,
        out_shape=(out_sds, out_sds),
        grid_spec=pltpu.PrefetchScalarGridSpec(
            num_scalar_prefetch=0,
            grid=(steps,),
            in_specs=[
                pl.BlockSpec((Bt, C, HW), lambda i: (i, 0, 0)),
                pl.BlockSpec((Bt, C, HW), lambda i: (i, 0, 0)),
                pl.BlockSpec((_T, C_out, C), lambda i: (0, 0, 0)),
                pl.BlockSpec((C_out, 1), lambda i: (0, 0)),
            ],
            out_specs=[
                pl.BlockSpec((Bt, C, HW), lambda i: (i, 0, 0)),
                pl.BlockSpec((Bt, C, HW), lambda i: (i, 0, 0)),
            ],
        ),
        compiler_params=pltpu.CompilerParams(
            dimension_semantics=("parallel",),
            vmem_limit_bytes=vmem_limit),
    )(xl, xu, w_taps, b_col)

    zl = zl[:B].reshape(B, C, H, W)
    zu = zu[:B].reshape(B, C, H, W)
    return zl, zu


def _reference(x_lower, x_upper, conv_weight, conv_bias,
               matmul_dtype=jnp.float32):
    """Pure-JAX reference: masked 'A' conv + affine subset transform.

    matmul_dtype=bfloat16 reproduces the kernel's MXU numerics (bf16 operands,
    f32 accumulation); float32 is the full-precision reference.
    """
    C = x_lower.shape[1]
    mask = jnp.array([[1., 1., 1.],
                      [1., 0., 0.],
                      [0., 0., 0.]], dtype=jnp.float32)
    w = (conv_weight.astype(jnp.float32) * mask[None, None, :, :]
         ).astype(matmul_dtype)
    x = x_lower.astype(matmul_dtype)
    params = jax.lax.conv_general_dilated(
        x, w, window_strides=(1, 1), padding="SAME",
        dimension_numbers=("NCHW", "OIHW", "NCHW"),
        preferred_element_type=jnp.float32,
        precision=jax.lax.Precision.HIGHEST)
    params = params + conv_bias.astype(jnp.float32)[None, :, None, None]
    shift, uscale = params[:, :C], params[:, C:]
    scale = jax.nn.sigmoid(uscale + 2.0)
    xl32 = x_lower.astype(jnp.float32)
    xu32 = x_upper.astype(jnp.float32)
    return scale * xl32 + shift, scale * xu32 + shift


if __name__ == "__main__":
    import numpy as np

    B, C, H, W = 2, 4, 16, 16
    key = jax.random.PRNGKey(0)
    k1, k2, k3, k4 = jax.random.split(key, 4)

    x_lower = jax.random.normal(k1, (B, C, H, W), dtype=jnp.float32)
    # upper corner of the cube: x_upper >= x_lower
    x_upper = x_lower + jax.nn.softplus(
        jax.random.normal(k2, (B, C, H, W), dtype=jnp.float32))

    # Deterministic parameter init (synthetic; no checkpoint load).
    conv_weight = 0.1 * jax.random.normal(k3, (2 * C, C, K, K), dtype=jnp.float32)
    conv_bias = 0.05 * jax.random.normal(k4, (2 * C,), dtype=jnp.float32)

    z_lower, z_upper = autoregressive_subset_transform_2d(
        x_lower, x_upper, conv_weight, conv_bias)
    jax.block_until_ready((z_lower, z_upper))

    # (1) Matched-precision reference (bf16 operands, f32 accumulation — the
    #     same products the kernel's MXU computes): validates taps / masks /
    #     affine logic to tight tolerance.
    rl, ru = _reference(x_lower, x_upper, conv_weight, conv_bias,
                        matmul_dtype=jnp.bfloat16)
    np.testing.assert_allclose(np.asarray(z_lower), np.asarray(rl),
                               rtol=1e-3, atol=1e-3)
    np.testing.assert_allclose(np.asarray(z_upper), np.asarray(ru),
                               rtol=1e-3, atol=1e-3)

    # (2) Full-f32 reference: reduced-precision drift stays within the bound
    #     expected from bf16 matmul operands.
    rl32, ru32 = _reference(x_lower, x_upper, conv_weight, conv_bias,
                            matmul_dtype=jnp.float32)
    np.testing.assert_allclose(np.asarray(z_lower), np.asarray(rl32),
                               rtol=5e-2, atol=5e-2)
    np.testing.assert_allclose(np.asarray(z_upper), np.asarray(ru32),
                               rtol=5e-2, atol=5e-2)

    assert z_lower.shape == (B, C, H, W) and z_upper.shape == (B, C, H, W)
    print("KERNEL_OK")
</pallas_src>

<mosaic_0001>
module attributes {stable_mosaic.version = 11 : i64} {
  func.func @kernel(%arg0: i32, %arg1: memref<2x4x256xf32, #tpu.memory_space<vmem>>, %arg2: memref<2x4x256xf32, #tpu.memory_space<vmem>>, %arg3: memref<4x8x4xf32, #tpu.memory_space<vmem>>, %arg4: memref<8x1xf32, #tpu.memory_space<vmem>>, %arg5: memref<2x4x256xf32, #tpu.memory_space<vmem>>, %arg6: memref<2x4x256xf32, #tpu.memory_space<vmem>>) attributes {dimension_semantics = [#tpu.dimension_semantics<parallel>], iteration_bounds = array<i64: 1>, scalar_prefetch = 0 : i64, scratch_operands = 0 : i64, tpu.core_type = #tpu.core_type<tc>, window_params = [{transform_indices = @transform_0, window_bounds = array<i64: 2, 4, 256>}, {transform_indices = @transform_1, window_bounds = array<i64: 2, 4, 256>}, {pipeline_mode = #tpu.pipeline_mode<synchronous>, transform_indices = @transform_2, window_bounds = array<i64: 4, 8, 4>}, {pipeline_mode = #tpu.pipeline_mode<synchronous>, transform_indices = @transform_3, window_bounds = array<i64: 8, 1>}, {transform_indices = @transform_4, window_bounds = array<i64: 2, 4, 256>}, {transform_indices = @transform_5, window_bounds = array<i64: 2, 4, 256>}]} {
    %c0 = arith.constant 0 : index
    %c0_0 = arith.constant 0 : index
    %c0_1 = arith.constant 0 : index
    %0 = vector.load %arg1[%c0, %c0_0, %c0_1] : memref<2x4x256xf32, #tpu.memory_space<vmem>>, vector<2x4x256xf32>
    %1 = tpu.iota {dimensions = array<i32: 2>} : vector<1x1x256xi32>
    %c16_i32 = arith.constant 16 : i32
    %c0_i32 = arith.constant 0 : i32
    %2 = arith.cmpi eq, %c16_i32, %c0_i32 : i32
    %c1_i32 = arith.constant 1 : i32
    %3 = arith.select %2, %c1_i32, %c16_i32 : i32
    %4 = vector.broadcast %3 : i32 to vector<1x1x256xi32>
    %5 = arith.remsi %1, %4 : vector<1x1x256xi32>
    %c0_i32_2 = arith.constant 0 : i32
    %6 = vector.broadcast %c0_i32_2 : i32 to vector<1x1x256xi32>
    %7 = arith.cmpi ne, %5, %6 : vector<1x1x256xi32>
    %c0_i32_3 = arith.constant 0 : i32
    %8 = vector.broadcast %c0_i32_3 : i32 to vector<1x1x256xi32>
    %9 = arith.cmpi slt, %5, %8 : vector<1x1x256xi32>
    %c0_i32_4 = arith.constant 0 : i32
    %10 = arith.cmpi slt, %3, %c0_i32_4 : i32
    %11 = vector.broadcast %10 : i1 to vector<1x1x256xi1>
    %12 = vector.broadcast %11 : vector<1x1x256xi1> to vector<1x1x256xi1>
    %13 = arith.xori %9, %12 : vector<1x1x256xi1>
    %14 = arith.andi %13, %7 : vector<1x1x256xi1>
    %15 = vector.broadcast %3 : i32 to vector<1x1x256xi32>
    %16 = arith.addi %5, %15 : vector<1x1x256xi32>
    %17 = arith.select %14, %16, %5 : vector<1x1x256xi1>, vector<1x1x256xi32>
    %c16_i32_5 = arith.constant 16 : i32
    %18 = vector.broadcast %c16_i32_5 : i32 to vector<1x1x256xi32>
    %19 = arith.cmpi sge, %1, %18 : vector<1x1x256xi32>
    %c1_i32_6 = arith.constant 1 : i32
    %20 = vector.broadcast %c1_i32_6 : i32 to vector<1x1x256xi32>
    %21 = arith.cmpi sge, %17, %20 : vector<1x1x256xi32>
    %c15_i32 = arith.constant 15 : i32
    %22 = vector.broadcast %c15_i32 : i32 to vector<1x1x256xi32>
    %23 = arith.cmpi slt, %17, %22 : vector<1x1x256xi32>
    %24 = arith.andi %19, %21 : vector<1x1x256xi1>
    %25 = arith.andi %19, %23 : vector<1x1x256xi1>
    %c0_7 = arith.constant 0 : index
    %c0_8 = arith.constant 0 : index
    %c0_9 = arith.constant 0 : index
    %26 = vector.load %arg3[%c0_7, %c0_8, %c0_9] : memref<4x8x4xf32, #tpu.memory_space<vmem>>, vector<4x8x4xf32>
    %c17_i32 = arith.constant 17 : i32
    %27 = tpu.dynamic_rotate %0 by %c17_i32 dim 2 : vector<2x4x256xf32>, i32 -> vector<2x4x256xf32>
    %cst = arith.constant 0.000000e+00 : f32
    %28 = vector.shape_cast %24 : vector<1x1x256xi1> to vector<1x1x256xi1>
    %29 = vector.broadcast %28 : vector<1x1x256xi1> to vector<2x4x256xi1>
    %30 = vector.broadcast %cst : f32 to vector<2x4x256xf32>
    %31 = arith.select %29, %27, %30 : vector<2x4x256xi1>, vector<2x4x256xf32>
    %32 = arith.truncf %31 : vector<2x4x256xf32> to vector<2x4x256xbf16>
    %33 = vector.extract_strided_slice %26 {offsets = [0, 0, 0], sizes = [1, 8, 4], strides = [1, 1, 1]} : vector<4x8x4xf32> to vector<1x8x4xf32>
    %34 = vector.shape_cast %33 : vector<1x8x4xf32> to vector<8x4xf32>
    %35 = vector.shape_cast %34 : vector<8x4xf32> to vector<1x8x4xf32>
    %36 = vector.shape_cast %35 : vector<1x8x4xf32> to vector<1x8x4xf32>
    %37 = vector.broadcast %36 : vector<1x8x4xf32> to vector<2x8x4xf32>
    %38 = arith.truncf %37 : vector<2x8x4xf32> to vector<2x8x4xbf16>
    %cst_10 = arith.constant dense<0.000000e+00> : vector<2x8x256xf32>
    %39 = tpu.matmul %38, %32, %cst_10 {dimension_numbers = #tpu.dot_dimension_numbers<[2], [1], [1], [2], [0, 0, 0, 1, 1, 2], [0], [0]>} : vector<2x8x4xbf16>, vector<2x4x256xbf16>, vector<2x8x256xf32> -> vector<2x8x256xf32>
    %c16_i32_11 = arith.constant 16 : i32
    %40 = tpu.dynamic_rotate %0 by %c16_i32_11 dim 2 : vector<2x4x256xf32>, i32 -> vector<2x4x256xf32>
    %cst_12 = arith.constant 0.000000e+00 : f32
    %41 = vector.shape_cast %19 : vector<1x1x256xi1> to vector<1x1x256xi1>
    %42 = vector.broadcast %41 : vector<1x1x256xi1> to vector<2x4x256xi1>
    %43 = vector.broadcast %cst_12 : f32 to vector<2x4x256xf32>
    %44 = arith.select %42, %40, %43 : vector<2x4x256xi1>, vector<2x4x256xf32>
    %45 = arith.truncf %44 : vector<2x4x256xf32> to vector<2x4x256xbf16>
    %46 = vector.extract_strided_slice %26 {offsets = [1, 0, 0], sizes = [1, 8, 4], strides = [1, 1, 1]} : vector<4x8x4xf32> to vector<1x8x4xf32>
    %47 = vector.shape_cast %46 : vector<1x8x4xf32> to vector<8x4xf32>
    %48 = vector.shape_cast %47 : vector<8x4xf32> to vector<1x8x4xf32>
    %49 = vector.shape_cast %48 : vector<1x8x4xf32> to vector<1x8x4xf32>
    %50 = vector.broadcast %49 : vector<1x8x4xf32> to vector<2x8x4xf32>
    %51 = arith.truncf %50 : vector<2x8x4xf32> to vector<2x8x4xbf16>
    %cst_13 = arith.constant dense<0.000000e+00> : vector<2x8x256xf32>
    %52 = tpu.matmul %51, %45, %cst_13 {dimension_numbers = #tpu.dot_dimension_numbers<[2], [1], [1], [2], [0, 0, 0, 1, 1, 2], [0], [0]>} : vector<2x8x4xbf16>, vector<2x4x256xbf16>, vector<2x8x256xf32> -> vector<2x8x256xf32>
    %53 = arith.addf %39, %52 : vector<2x8x256xf32>
    %c15_i32_14 = arith.constant 15 : i32
    %54 = tpu.dynamic_rotate %0 by %c15_i32_14 dim 2 : vector<2x4x256xf32>, i32 -> vector<2x4x256xf32>
    %cst_15 = arith.constant 0.000000e+00 : f32
    %55 = vector.shape_cast %25 : vector<1x1x256xi1> to vector<1x1x256xi1>
    %56 = vector.broadcast %55 : vector<1x1x256xi1> to vector<2x4x256xi1>
    %57 = vector.broadcast %cst_15 : f32 to vector<2x4x256xf32>
    %58 = arith.select %56, %54, %57 : vector<2x4x256xi1>, vector<2x4x256xf32>
    %59 = arith.truncf %58 : vector<2x4x256xf32> to vector<2x4x256xbf16>
    %60 = vector.extract_strided_slice %26 {offsets = [2, 0, 0], sizes = [1, 8, 4], strides = [1, 1, 1]} : vector<4x8x4xf32> to vector<1x8x4xf32>
    %61 = vector.shape_cast %60 : vector<1x8x4xf32> to vector<8x4xf32>
    %62 = vector.shape_cast %61 : vector<8x4xf32> to vector<1x8x4xf32>
    %63 = vector.shape_cast %62 : vector<1x8x4xf32> to vector<1x8x4xf32>
    %64 = vector.broadcast %63 : vector<1x8x4xf32> to vector<2x8x4xf32>
    %65 = arith.truncf %64 : vector<2x8x4xf32> to vector<2x8x4xbf16>
    %cst_16 = arith.constant dense<0.000000e+00> : vector<2x8x256xf32>
    %66 = tpu.matmul %65, %59, %cst_16 {dimension_numbers = #tpu.dot_dimension_numbers<[2], [1], [1], [2], [0, 0, 0, 1, 1, 2], [0], [0]>} : vector<2x8x4xbf16>, vector<2x4x256xbf16>, vector<2x8x256xf32> -> vector<2x8x256xf32>
    %67 = arith.addf %53, %66 : vector<2x8x256xf32>
    %c1_i32_17 = arith.constant 1 : i32
    %68 = tpu.dynamic_rotate %0 by %c1_i32_17 dim 2 : vector<2x4x256xf32>, i32 -> vector<2x4x256xf32>
    %cst_18 = arith.constant 0.000000e+00 : f32
    %69 = vector.shape_cast %21 : vector<1x1x256xi1> to vector<1x1x256xi1>
    %70 = vector.broadcast %69 : vector<1x1x256xi1> to vector<2x4x256xi1>
    %71 = vector.broadcast %cst_18 : f32 to vector<2x4x256xf32>
    %72 = arith.select %70, %68, %71 : vector<2x4x256xi1>, vector<2x4x256xf32>
    %73 = arith.truncf %72 : vector<2x4x256xf32> to vector<2x4x256xbf16>
    %74 = vector.extract_strided_slice %26 {offsets = [3, 0, 0], sizes = [1, 8, 4], strides = [1, 1, 1]} : vector<4x8x4xf32> to vector<1x8x4xf32>
    %75 = vector.shape_cast %74 : vector<1x8x4xf32> to vector<8x4xf32>
    %76 = vector.shape_cast %75 : vector<8x4xf32> to vector<1x8x4xf32>
    %77 = vector.shape_cast %76 : vector<1x8x4xf32> to vector<1x8x4xf32>
    %78 = vector.broadcast %77 : vector<1x8x4xf32> to vector<2x8x4xf32>
    %79 = arith.truncf %78 : vector<2x8x4xf32> to vector<2x8x4xbf16>
    %cst_19 = arith.constant dense<0.000000e+00> : vector<2x8x256xf32>
    %80 = tpu.matmul %79, %73, %cst_19 {dimension_numbers = #tpu.dot_dimension_numbers<[2], [1], [1], [2], [0, 0, 0, 1, 1, 2], [0], [0]>} : vector<2x8x4xbf16>, vector<2x4x256xbf16>, vector<2x8x256xf32> -> vector<2x8x256xf32>
    %81 = arith.addf %67, %80 : vector<2x8x256xf32>
    %c0_20 = arith.constant 0 : index
    %c0_21 = arith.constant 0 : index
    %82 = vector.load %arg4[%c0_20, %c0_21] : memref<8x1xf32, #tpu.memory_space<vmem>>, vector<8x1xf32>
    %83 = vector.shape_cast %82 : vector<8x1xf32> to vector<1x8x1xf32>
    %84 = vector.broadcast %83 : vector<1x8x1xf32> to vector<2x8x256xf32>
    %85 = arith.addf %81, %84 : vector<2x8x256xf32>
    %86 = vector.extract_strided_slice %85 {offsets = [0, 0, 0], sizes = [2, 4, 256], strides = [1, 1, 1]} : vector<2x8x256xf32> to vector<2x4x256xf32>
    %87 = vector.extract_strided_slice %85 {offsets = [0, 4, 0], sizes = [2, 4, 256], strides = [1, 1, 1]} : vector<2x8x256xf32> to vector<2x4x256xf32>
    %cst_22 = arith.constant 2.000000e+00 : f32
    %88 = vector.broadcast %cst_22 : f32 to vector<2x4x256xf32>
    %89 = arith.addf %87, %88 : vector<2x4x256xf32>
    %90 = arith.negf %89 : vector<2x4x256xf32>
    %91 = math.exp %90 : vector<2x4x256xf32>
    %cst_23 = arith.constant 1.000000e+00 : f32
    %92 = vector.broadcast %cst_23 : f32 to vector<2x4x256xf32>
    %93 = arith.addf %92, %91 : vector<2x4x256xf32>
    %94 = arith.divf %92, %93 : vector<2x4x256xf32>
    %95 = arith.mulf %94, %0 : vector<2x4x256xf32>
    %96 = arith.addf %95, %86 : vector<2x4x256xf32>
    %c0_24 = arith.constant 0 : index
    %c0_25 = arith.constant 0 : index
    %c0_26 = arith.constant 0 : index
    %97 = vector.load %arg5[%c0_24, %c0_25, %c0_26] : memref<2x4x256xf32, #tpu.memory_space<vmem>>, vector<2x4x256xf32>
    tpu.vector_store %arg5[%c0_24, %c0_25, %c0_26], %96 {strides = array<i32>} : memref<2x4x256xf32, #tpu.memory_space<vmem>>, vector<2x4x256xf32>,
    %c0_27 = arith.constant 0 : index
    %c0_28 = arith.constant 0 : index
    %c0_29 = arith.constant 0 : index
    %98 = vector.load %arg2[%c0_27, %c0_28, %c0_29] : memref<2x4x256xf32, #tpu.memory_space<vmem>>, vector<2x4x256xf32>
    %99 = arith.mulf %94, %98 : vector<2x4x256xf32>
    %100 = arith.addf %99, %86 : vector<2x4x256xf32>
    %c0_30 = arith.constant 0 : index
    %c0_31 = arith.constant 0 : index
    %c0_32 = arith.constant 0 : index
    %101 = vector.load %arg6[%c0_30, %c0_31, %c0_32] : memref<2x4x256xf32, #tpu.memory_space<vmem>>, vector<2x4x256xf32>
    tpu.vector_store %arg6[%c0_30, %c0_31, %c0_32], %100 {strides = array<i32>} : memref<2x4x256xf32, #tpu.memory_space<vmem>>, vector<2x4x256xf32>,
    return
  }
  func.func @transform_0(%arg0: i32) -> (i32, i32, i32) {
    %c0_i32 = arith.constant 0 : i32
    %c0_i32_0 = arith.constant 0 : i32
    %c0_i32_1 = arith.constant 0 : i32
    return %arg0, %c0_i32, %c0_i32_0 : i32, i32, i32
  }
  func.func @transform_1(%arg0: i32) -> (i32, i32, i32) {
    %c0_i32 = arith.constant 0 : i32
    %c0_i32_0 = arith.constant 0 : i32
    %c0_i32_1 = arith.constant 0 : i32
    return %arg0, %c0_i32, %c0_i32_0 : i32, i32, i32
  }
  func.func @transform_2(%arg0: i32) -> (i32, i32, i32) {
    %c0_i32 = arith.constant 0 : i32
    %c0_i32_0 = arith.constant 0 : i32
    %c0_i32_1 = arith.constant 0 : i32
    %c0_i32_2 = arith.constant 0 : i32
    return %c0_i32, %c0_i32_0, %c0_i32_1 : i32, i32, i32
  }
  func.func @transform_3(%arg0: i32) -> (i32, i32) {
    %c0_i32 = arith.constant 0 : i32
    %c0_i32_0 = arith.constant 0 : i32
    %c0_i32_1 = arith.constant 0 : i32
    return %c0_i32, %c0_i32_0 : i32, i32
  }
  func.func @transform_4(%arg0: i32) -> (i32, i32, i32) {
    %c0_i32 = arith.constant 0 : i32
    %c0_i32_0 = arith.constant 0 : i32
    %c0_i32_1 = arith.constant 0 : i32
    return %arg0, %c0_i32, %c0_i32_0 : i32, i32, i32
  }
  func.func @transform_5(%arg0: i32) -> (i32, i32, i32) {
    %c0_i32 = arith.constant 0 : i32
    %c0_i32_0 = arith.constant 0 : i32
    %c0_i32_1 = arith.constant 0 : i32
    return %arg0, %c0_i32, %c0_i32_0 : i32, i32, i32
  }
}

</mosaic_0001>

<llo_original>
// kernel: autoregressive_subset_transform_2d.1
$region0: #{autoregressive_subset_transform_2d.1}
  #allocation0 [shape = 'u32[]', space=smem, size = 0x4, offset = 0x4, fixed_abs, tag = 'smem constant byte address 0x4 - core index']
  #allocation1 [shape = 'u32[144,128]{1,0:T(1,128)}', space=vmem, size = 0x12000, scoped, tag = 'internal scratch']
  %s0 = inlined_call_operand.vmem [shape: f32[2,4,256], index: 0, kind: input, shape index: {}]
  %s1 = inlined_call_operand.vmem [shape: f32[2,4,256], index: 1, kind: input, shape index: {}]
  %s2 = inlined_call_operand.vmem [shape: f32[4,8,4], index: 2, kind: input, shape index: {}]
  %s3 = inlined_call_operand.vmem [shape: f32[8,1], index: 3, kind: input, shape index: {}]
  %s4 = inlined_call_operand.vmem [shape: f32[2,4,256], index: 4, kind: output, shape index: {0}]
  %s5 = inlined_call_operand.vmem [shape: f32[2,4,256], index: 5, kind: output, shape index: {1}]
  %6 = xla_tuple %s4, %s5
  %s7 = sld [smem:[#allocation0]]
  $region34: #{autoregressive_subset_transform_2d.1} parent=0
    _
  %s9 = ssub.s32 1, %s7
  %s10 = scalar_select 0, %s9, %s7
  // Predicated region
  $region2: #{autoregressive_subset_transform_2d.1} parent=0 // pred_check
    _
  $region3: #{autoregressive_subset_transform_2d.1} parent=0 // pred_check_branch
    %12 = sbr.rel (0) target = $region5
  $region4: #{autoregressive_subset_transform_2d.1} parent=0 // pred_region
    _
  $region5: #{autoregressive_subset_transform_2d.1} parent=0 // pred_fallthru
    _
  // Predicated region
  $region6: #{autoregressive_subset_transform_2d.1} parent=0 // pred_check
    _
  $region7: #{autoregressive_subset_transform_2d.1} parent=0 // pred_check_branch
    %14 = sbr.rel (0) target = $region9
  $region8: #{autoregressive_subset_transform_2d.1} parent=0 // pred_region
    _
  $region9: #{autoregressive_subset_transform_2d.1} parent=0 // pred_fallthru
    _
  // Predicated region
  $region10: #{autoregressive_subset_transform_2d.1} parent=0 // pred_check
    _
  $region11: #{autoregressive_subset_transform_2d.1} parent=0 // pred_check_branch
    %16 = sbr.rel (0) target = $region13
  $region12: #{autoregressive_subset_transform_2d.1} parent=0 // pred_region
    _
  $region13: #{autoregressive_subset_transform_2d.1} parent=0 // pred_fallthru
    _
  // Predicated region
  $region14: #{autoregressive_subset_transform_2d.1} parent=0 // pred_check
    _
  $region15: #{autoregressive_subset_transform_2d.1} parent=0 // pred_check_branch
    %18 = sbr.rel (0) target = $region17
  $region16: #{autoregressive_subset_transform_2d.1} parent=0 // pred_region
    _
  $region17: #{autoregressive_subset_transform_2d.1} parent=0 // pred_fallthru
    _
  %v20 = vld [vmem:[%s0] sm:$0xff]
  %v21 = vld [vmem:[%s0 + $0x8] sm:$0xff]
  %v22 = vlaneseq
  %v23 = vand.u32 %v22, 127
  %v24 = vadd.s32 %v23, 128
  %vm25 = vcmp.lt.s32.totalorder %v23, 0
  %v26 = vsub.s32 0, %v23
  %v27 = vsel %vm25, %v26, %v23
  %v28 = vshrl.u32 %v27, 4
  %v29 = vand.u32 %v27, 15
  %v30 = vsub.s32 0, %v29
  %v31 = vsel %vm25, %v30, %v29
  %vm32 = vcmp.lt.s32.totalorder %v24, 0
  %v33 = vsub.s32 0, %v24
  %v34 = vsel %vm32, %v33, %v24
  %v35 = vshrl.u32 %v34, 4
  %v36 = vand.u32 %v34, 15
  %v37 = vsub.s32 0, %v36
  %v38 = vsel %vm32, %v37, %v36
  %vm39 = vcmp.ne.s32.totalorder %v31, 0
  %vm40 = vcmp.ne.s32.totalorder %v38, 0
  %vm41 = vcmp.lt.s32.totalorder %v31, 0
  %vm42 = vcmp.lt.s32.totalorder %v38, 0
  %vm43 = vmand %vm41, %vm39
  %vm44 = vmand %vm42, %vm40
  %v45 = vadd.s32 %v31, 16
  %v46 = vadd.s32 %v38, 16
  %v47 = vsel %vm43, %v45, %v31
  %v48 = vsel %vm44, %v46, %v38
  %vm49 = vcmp.ge.s32.totalorder %v23, 16
  %vm50 = vcmp.ge.s32.totalorder %v24, 16
  %vm51 = vcmp.ge.s32.totalorder %v47, 1
  %vm52 = vcmp.ge.s32.totalorder %v48, 1
  %vm53 = vcmp.lt.s32.totalorder %v47, 15
  %vm54 = vcmp.lt.s32.totalorder %v48, 15
  %vm55 = vmand %vm49, %vm51
  %vm56 = vmand %vm50, %vm52
  %vm57 = vmand %vm49, %vm53
  %vm58 = vmand %vm50, %vm54
  %v59 = vld [vmem:[%s2] sm:$0xff]
  %v60 = vld [vmem:[%s2 + $0x8] sm:$0xff]
  %v61 = vld [vmem:[%s2 + $0x10] sm:$0xff]
  %v62 = vld [vmem:[%s2 + $0x18] sm:$0xff]
  %v65 = vcombine.high %v20, %v20
  %v66 = vcombine.high %v21, %v21
  %69 = vrot.lane.b32.xlu0 %v20, 17
  %v70 = vpop.permute.xlu0 %69
  %71 = vrot.lane.b32.xlu0 %v21, 17
  %v72 = vpop.permute.xlu0 %71
  %73 = vrot.lane.b32.xlu0 %v65, 17
  %v74 = vpop.permute.xlu0 %73
  %75 = vrot.lane.b32.xlu0 %v66, 17
  %v76 = vpop.permute.xlu0 %75
  %vm77 = vcmp.lt.s32.totalorder %v23, 17
  %v78 = vsel %vm77, %v70, %v74
  %v79 = vsel %vm77, %v72, %v76
  %v80 = vsel %vm77, %v74, %v70
  %v81 = vsel %vm77, %v76, %v72
  %v82 = vsel %vm55, 1, 0
  %v83 = vsel %vm56, 1, 0
  %vm84 = vcmp.eq.s32.totalorder %v82, 1
  %vm85 = vcmp.eq.s32.totalorder %v83, 1
  %v86 = vsel %vm84, %v80, 0.0
  %v87 = vsel %vm85, %v78, 0.0
  %v88 = vsel %vm84, %v81, 0.0
  %v89 = vsel %vm85, %v79, 0.0
  %v90 = vpack.c.bf16 %v86, %v86
  %v91 = vpack.c.bf16 %v87, %v87
  %v92 = vpack.c.bf16 %v88, %v88
  %v93 = vpack.c.bf16 %v89, %v89
  %v94 = vpack.c.bf16 %v59, %v59
  %95 = vrot.lane.b32.xlu0 %v20, 16
  %v96 = vpop.permute.xlu0 %95
  %97 = vrot.lane.b32.xlu0 %v21, 16
  %v98 = vpop.permute.xlu0 %97
  %99 = vrot.lane.b32.xlu0 %v65, 16
  %v100 = vpop.permute.xlu0 %99
  %101 = vrot.lane.b32.xlu0 %v66, 16
  %v102 = vpop.permute.xlu0 %101
  %vm103 = vcmp.lt.s32.totalorder %v23, 16
  %v104 = vsel %vm103, %v96, %v100
  %v105 = vsel %vm103, %v98, %v102
  %v106 = vsel %vm103, %v100, %v96
  %v107 = vsel %vm103, %v102, %v98
  %v108 = vsel %vm49, 1, 0
  %v109 = vsel %vm50, 1, 0
  %vm110 = vcmp.eq.s32.totalorder %v108, 1
  %vm111 = vcmp.eq.s32.totalorder %v109, 1
  %v112 = vsel %vm110, %v106, 0.0
  %v113 = vsel %vm111, %v104, 0.0
  %v114 = vsel %vm110, %v107, 0.0
  %v115 = vsel %vm111, %v105, 0.0
  %v116 = vpack.c.bf16 %v112, %v112
  %v117 = vpack.c.bf16 %v113, %v113
  %v118 = vpack.c.bf16 %v114, %v114
  %v119 = vpack.c.bf16 %v115, %v115
  %v120 = vpack.c.bf16 %v60, %v60
  %vm121 = vcmask 31744
  %v123 = vsel %vm121, %v120, 0
  %vm125 = vcmask 1041408
  %v127 = vsel %vm125, %v116, 0
  %v130 = vsel %vm125, %v117, 0
  %132 = vmatprep.subr.bf16.mxu0 %v130
  %133 = vmatpush1.bf16.msra.mxu0 %v127
  %134 = vmatprep.subr.bf16.mxu0 0
  %135 = vmatpush1.bf16.msra.mxu0 0
  %136 = vmatprep.subr.bf16.mxu0 0
  %137 = vmatpush1.bf16.msra.mxu0 0
  %138 = vmatprep.subr.bf16.mxu0 0
  %139 = vmatpush1.bf16.msra.mxu0 0
  %140 = vmatprep.subr.bf16.mxu0 0
  %141 = vmatpush1.bf16.msra.mxu0 0
  %142 = vmatprep.subr.bf16.mxu0 0
  %143 = vmatpush1.bf16.msra.mxu0 0
  %144 = vmatprep.subr.bf16.mxu0 0
  %145 = vmatpush1.bf16.msra.mxu0 0
  %146 = vmatprep.subr.bf16.mxu0 0
  %147 = vmatpush1.bf16.msra.mxu0 0
  %148 = vmatprep.subr.bf16.mxu0 0
  %149 = vmatpush1.bf16.msra.mxu0 0
  %150 = vmatprep.subr.bf16.mxu0 0
  %151 = vmatpush1.bf16.msra.mxu0 0
  %152 = vmatprep.subr.bf16.mxu0 0
  %153 = vmatpush1.bf16.msra.mxu0 0
  %154 = vmatprep.subr.bf16.mxu0 0
  %155 = vmatpush1.bf16.msra.mxu0 0
  %156 = vmatprep.subr.bf16.mxu0 0
  %157 = vmatpush1.bf16.msra.mxu0 0
  %158 = vmatprep.subr.bf16.mxu0 0
  %159 = vmatpush1.bf16.msra.mxu0 0
  %160 = vmatprep.subr.bf16.mxu0 0
  %161 = vmatpush1.bf16.msra.mxu0 0
  %162 = vmatprep.subr.bf16.mxu0 0
  %163 = vmatpush1.bf16.msra.mxu0 0
  %164 = vmatprep.mubr.bf16.mxu0 0
  %165 = vmatmul.mubr.bf16.gmra.mrb[0].mxu0 %v123
  %v166 = vpop.f32.mrb[0].mxu0
  %v167 = vadd.f32 0.0, %v166
  %v168 = vpop.f32.mrb[0].mxu0
  %v169 = vadd.f32 0.0, %v168
  %v170 = vpop.f32.mrb[0].mxu0
  %v171 = vpop.f32.mrb[0].mxu0
  %172 = vdwg.mxu0
  %v174 = vsel %vm125, %v118, 0
  %v177 = vsel %vm125, %v119, 0
  %179 = vmatprep.subr.bf16.mxu0 %v177
  %180 = vmatpush1.bf16.msra.mxu0 %v174
  %181 = vmatprep.subr.bf16.mxu0 0
  %182 = vmatpush1.bf16.msra.mxu0 0
  %183 = vmatprep.subr.bf16.mxu0 0
  %184 = vmatpush1.bf16.msra.mxu0 0
  %185 = vmatprep.subr.bf16.mxu0 0
  %186 = vmatpush1.bf16.msra.mxu0 0
  %187 = vmatprep.subr.bf16.mxu0 0
  %188 = vmatpush1.bf16.msra.mxu0 0
  %189 = vmatprep.subr.bf16.mxu0 0
  %190 = vmatpush1.bf16.msra.mxu0 0
  %191 = vmatprep.subr.bf16.mxu0 0
  %192 = vmatpush1.bf16.msra.mxu0 0
  %193 = vmatprep.subr.bf16.mxu0 0
  %194 = vmatpush1.bf16.msra.mxu0 0
  %195 = vmatprep.subr.bf16.mxu0 0
  %196 = vmatpush1.bf16.msra.mxu0 0
  %197 = vmatprep.subr.bf16.mxu0 0
  %198 = vmatpush1.bf16.msra.mxu0 0
  %199 = vmatprep.subr.bf16.mxu0 0
  %200 = vmatpush1.bf16.msra.mxu0 0
  %201 = vmatprep.subr.bf16.mxu0 0
  %202 = vmatpush1.bf16.msra.mxu0 0
  %203 = vmatprep.subr.bf16.mxu0 0
  %204 = vmatpush1.bf16.msra.mxu0 0
  %205 = vmatprep.subr.bf16.mxu0 0
  %206 = vmatpush1.bf16.msra.mxu0 0
  %207 = vmatprep.subr.bf16.mxu0 0
  %208 = vmatpush1.bf16.msra.mxu0 0
  %209 = vmatprep.subr.bf16.mxu0 0
  %210 = vmatpush1.bf16.msra.mxu0 0
  %211 = vmatprep.mubr.bf16.mxu0 0
  %212 = vmatmul.mubr.bf16.gmra.mrb[0].mxu0 %v123
  %v213 = vpop.f32.mrb[0].mxu0
  %v214 = vadd.f32 0.0, %v213
  %v215 = vpop.f32.mrb[0].mxu0
  %v216 = vadd.f32 0.0, %v215
  %v217 = vpop.f32.mrb[0].mxu0
  %v218 = vpop.f32.mrb[0].mxu0
  %219 = vdwg.mxu0
  %v221 = vsel %vm121, %v94, 0
  %v224 = vsel %vm125, %v90, 0
  %v227 = vsel %vm125, %v91, 0
  %229 = vmatprep.subr.bf16.mxu0 %v227
  %230 = vmatpush1.bf16.msra.mxu0 %v224
  %231 = vmatprep.subr.bf16.mxu0 0
  %232 = vmatpush1.bf16.msra.mxu0 0
  %233 = vmatprep.subr.bf16.mxu0 0
  %234 = vmatpush1.bf16.msra.mxu0 0
  %235 = vmatprep.subr.bf16.mxu0 0
  %236 = vmatpush1.bf16.msra.mxu0 0
  %237 = vmatprep.subr.bf16.mxu0 0
  %238 = vmatpush1.bf16.msra.mxu0 0
  %239 = vmatprep.subr.bf16.mxu0 0
  %240 = vmatpush1.bf16.msra.mxu0 0
  %241 = vmatprep.subr.bf16.mxu0 0
  %242 = vmatpush1.bf16.msra.mxu0 0
  %243 = vmatprep.subr.bf16.mxu0 0
  %244 = vmatpush1.bf16.msra.mxu0 0
  %245 = vmatprep.subr.bf16.mxu0 0
  %246 = vmatpush1.bf16.msra.mxu0 0
  %247 = vmatprep.subr.bf16.mxu0 0
  %248 = vmatpush1.bf16.msra.mxu0 0
  %249 = vmatprep.subr.bf16.mxu0 0
  %250 = vmatpush1.bf16.msra.mxu0 0
  %251 = vmatprep.subr.bf16.mxu0 0
  %252 = vmatpush1.bf16.msra.mxu0 0
  %253 = vmatprep.subr.bf16.mxu0 0
  %254 = vmatpush1.bf16.msra.mxu0 0
  %255 = vmatprep.subr.bf16.mxu0 0
  %256 = vmatpush1.bf16.msra.mxu0 0
  %257 = vmatprep.subr.bf16.mxu0 0
  %258 = vmatpush1.bf16.msra.mxu0 0
  %259 = vmatprep.subr.bf16.mxu0 0
  %260 = vmatpush1.bf16.msra.mxu0 0
  %261 = vmatprep.mubr.bf16.mxu0 0
  %262 = vmatmul.mubr.bf16.gmra.mrb[0].mxu0 %v221
  %v263 = vpop.f32.mrb[0].mxu0
  %v264 = vadd.f32 %v167, %v263
  %v265 = vpop.f32.mrb[0].mxu0
  %v266 = vadd.f32 %v169, %v265
  %v267 = vpop.f32.mrb[0].mxu0
  %v268 = vpop.f32.mrb[0].mxu0
  %269 = vdwg.mxu0
  %v271 = vsel %vm125, %v92, 0
  %v274 = vsel %vm125, %v93, 0
  %276 = vmatprep.subr.bf16.mxu0 %v274
  %277 = vmatpush1.bf16.msra.mxu0 %v271
  %278 = vmatprep.subr.bf16.mxu0 0
  %279 = vmatpush1.bf16.msra.mxu0 0
  %280 = vmatprep.subr.bf16.mxu0 0
  %281 = vmatpush1.bf16.msra.mxu0 0
  %282 = vmatprep.subr.bf16.mxu0 0
  %283 = vmatpush1.bf16.msra.mxu0 0
  %284 = vmatprep.subr.bf16.mxu0 0
  %285 = vmatpush1.bf16.msra.mxu0 0
  %286 = vmatprep.subr.bf16.mxu0 0
  %287 = vmatpush1.bf16.msra.mxu0 0
  %288 = vmatprep.subr.bf16.mxu0 0
  %289 = vmatpush1.bf16.msra.mxu0 0
  %290 = vmatprep.subr.bf16.mxu0 0
  %291 = vmatpush1.bf16.msra.mxu0 0
  %292 = vmatprep.subr.bf16.mxu0 0
  %293 = vmatpush1.bf16.msra.mxu0 0
  %294 = vmatprep.subr.bf16.mxu0 0
  %295 = vmatpush1.bf16.msra.mxu0 0
  %296 = vmatprep.subr.bf16.mxu0 0
  %297 = vmatpush1.bf16.msra.mxu0 0
  %298 = vmatprep.subr.bf16.mxu0 0
  %299 = vmatpush1.bf16.msra.mxu0 0
  %300 = vmatprep.subr.bf16.mxu0 0
  %301 = vmatpush1.bf16.msra.mxu0 0
  %302 = vmatprep.subr.bf16.mxu0 0
  %303 = vmatpush1.bf16.msra.mxu0 0
  %304 = vmatprep.subr.bf16.mxu0 0
  %305 = vmatpush1.bf16.msra.mxu0 0
  %306 = vmatprep.subr.bf16.mxu0 0
  %307 = vmatpush1.bf16.msra.mxu0 0
  %308 = vmatprep.mubr.bf16.mxu0 0
  %309 = vmatmul.mubr.bf16.gmra.mrb[0].mxu0 %v221
  %v310 = vpop.f32.mrb[0].mxu0
  %v311 = vadd.f32 %v214, %v310
  %v312 = vpop.f32.mrb[0].mxu0
  %v313 = vadd.f32 %v216, %v312
  %v314 = vpop.f32.mrb[0].mxu0
  %v315 = vpop.f32.mrb[0].mxu0
  %316 = vdwg.mxu0
  %317 = vrot.lane.b32.xlu0 %v20, 15
  %v318 = vpop.permute.xlu0 %317
  %319 = vrot.lane.b32.xlu0 %v21, 15
  %v320 = vpop.permute.xlu0 %319
  %321 = vrot.lane.b32.xlu0 %v65, 15
  %v322 = vpop.permute.xlu0 %321
  %323 = vrot.lane.b32.xlu0 %v66, 15
  %v324 = vpop.permute.xlu0 %323
  %vm325 = vcmp.lt.s32.totalorder %v23, 15
  %v326 = vsel %vm325, %v318, %v322
  %v327 = vsel %vm325, %v320, %v324
  %v328 = vsel %vm325, %v322, %v318
  %v329 = vsel %vm325, %v324, %v320
  %v330 = vsel %vm57, 1, 0
  %v331 = vsel %vm58, 1, 0
  %vm332 = vcmp.eq.s32.totalorder %v330, 1
  %vm333 = vcmp.eq.s32.totalorder %v331, 1
  %v334 = vsel %vm332, %v328, 0.0
  %v335 = vsel %vm333, %v326, 0.0
  %v336 = vsel %vm332, %v329, 0.0
  %v337 = vsel %vm333, %v327, 0.0
  %v338 = vpack.c.bf16 %v334, %v334
  %v339 = vpack.c.bf16 %v335, %v335
  %v340 = vpack.c.bf16 %v336, %v336
  %v341 = vpack.c.bf16 %v337, %v337
  %v342 = vpack.c.bf16 %v61, %v61
  %v344 = vsel %vm121, %v342, 0
  %v347 = vsel %vm125, %v338, 0
  %v350 = vsel %vm125, %v339, 0
  %352 = vmatprep.subr.bf16.mxu0 %v350
  %353 = vmatpush1.bf16.msra.mxu0 %v347
  %354 = vmatprep.subr.bf16.mxu0 0
  %355 = vmatpush1.bf16.msra.mxu0 0
  %356 = vmatprep.subr.bf16.mxu0 0
  %357 = vmatpush1.bf16.msra.mxu0 0
  %358 = vmatprep.subr.bf16.mxu0 0
  %359 = vmatpush1.bf16.msra.mxu0 0
  %360 = vmatprep.subr.bf16.mxu0 0
  %361 = vmatpush1.bf16.msra.mxu0 0
  %362 = vmatprep.subr.bf16.mxu0 0
  %363 = vmatpush1.bf16.msra.mxu0 0
  %364 = vmatprep.subr.bf16.mxu0 0
  %365 = vmatpush1.bf16.msra.mxu0 0
  %366 = vmatprep.subr.bf16.mxu0 0
  %367 = vmatpush1.bf16.msra.mxu0 0
  %368 = vmatprep.subr.bf16.mxu0 0
  %369 = vmatpush1.bf16.msra.mxu0 0
  %370 = vmatprep.subr.bf16.mxu0 0
  %371 = vmatpush1.bf16.msra.mxu0 0
  %372 = vmatprep.subr.bf16.mxu0 0
  %373 = vmatpush1.bf16.msra.mxu0 0
  %374 = vmatprep.subr.bf16.mxu0 0
  %375 = vmatpush1.bf16.msra.mxu0 0
  %376 = vmatprep.subr.bf16.mxu0 0
  %377 = vmatpush1.bf16.msra.mxu0 0
  %378 = vmatprep.subr.bf16.mxu0 0
  %379 = vmatpush1.bf16.msra.mxu0 0
  %380 = vmatprep.subr.bf16.mxu0 0
  %381 = vmatpush1.bf16.msra.mxu0 0
  %382 = vmatprep.subr.bf16.mxu0 0
  %383 = vmatpush1.bf16.msra.mxu0 0
  %384 = vmatprep.mubr.bf16.mxu0 0
  %385 = vmatmul.mubr.bf16.gmra.mrb[0].mxu0 %v344
  %v386 = vpop.f32.mrb[0].mxu0
  %v387 = vadd.f32 0.0, %v386
  %v388 = vpop.f32.mrb[0].mxu0
  %v389 = vadd.f32 0.0, %v388
  %v390 = vpop.f32.mrb[0].mxu0
  %v391 = vpop.f32.mrb[0].mxu0
  %392 = vdwg.mxu0
  %v394 = vsel %vm125, %v340, 0
  %v397 = vsel %vm125, %v341, 0
  %399 = vmatprep.subr.bf16.mxu0 %v397
  %400 = vmatpush1.bf16.msra.mxu0 %v394
  %401 = vmatprep.subr.bf16.mxu0 0
  %402 = vmatpush1.bf16.msra.mxu0 0
  %403 = vmatprep.subr.bf16.mxu0 0
  %404 = vmatpush1.bf16.msra.mxu0 0
  %405 = vmatprep.subr.bf16.mxu0 0
  %406 = vmatpush1.bf16.msra.mxu0 0
  %407 = vmatprep.subr.bf16.mxu0 0
  %408 = vmatpush1.bf16.msra.mxu0 0
  %409 = vmatprep.subr.bf16.mxu0 0
  %410 = vmatpush1.bf16.msra.mxu0 0
  %411 = vmatprep.subr.bf16.mxu0 0
  %412 = vmatpush1.bf16.msra.mxu0 0
  %413 = vmatprep.subr.bf16.mxu0 0
  %414 = vmatpush1.bf16.msra.mxu0 0
  %415 = vmatprep.subr.bf16.mxu0 0
  %416 = vmatpush1.bf16.msra.mxu0 0
  %417 = vmatprep.subr.bf16.mxu0 0
  %418 = vmatpush1.bf16.msra.mxu0 0
  %419 = vmatprep.subr.bf16.mxu0 0
  %420 = vmatpush1.bf16.msra.mxu0 0
  %421 = vmatprep.subr.bf16.mxu0 0
  %422 = vmatpush1.bf16.msra.mxu0 0
  %423 = vmatprep.subr.bf16.mxu0 0
  %424 = vmatpush1.bf16.msra.mxu0 0
  %425 = vmatprep.subr.bf16.mxu0 0
  %426 = vmatpush1.bf16.msra.mxu0 0
  %427 = vmatprep.subr.bf16.mxu0 0
  %428 = vmatpush1.bf16.msra.mxu0 0
  %429 = vmatprep.subr.bf16.mxu0 0
  %430 = vmatpush1.bf16.msra.mxu0 0
  %431 = vmatprep.mubr.bf16.mxu0 0
  %432 = vmatmul.mubr.bf16.gmra.mrb[0].mxu0 %v344
  %v433 = vpop.f32.mrb[0].mxu0
  %v434 = vadd.f32 0.0, %v433
  %v435 = vpop.f32.mrb[0].mxu0
  %v436 = vadd.f32 0.0, %v435
  %v437 = vpop.f32.mrb[0].mxu0
  %v438 = vpop.f32.mrb[0].mxu0
  %439 = vdwg.mxu0
  %v440 = vadd.f32 %v264, %v387
  %v441 = vadd.f32 %v266, %v389
  %v442 = vadd.f32 %v311, %v434
  %v443 = vadd.f32 %v313, %v436
  %444 = vrot.lane.b32.xlu0 %v20, 1
  %v445 = vpop.permute.xlu0 %444
  %446 = vrot.lane.b32.xlu0 %v21, 1
  %v447 = vpop.permute.xlu0 %446
  %448 = vrot.lane.b32.xlu0 %v65, 1
  %v449 = vpop.permute.xlu0 %448
  %450 = vrot.lane.b32.xlu0 %v66, 1
  %v451 = vpop.permute.xlu0 %450
  %vm452 = vcmp.lt.s32.totalorder %v23, 1
  %v453 = vsel %vm452, %v445, %v449
  %v454 = vsel %vm452, %v447, %v451
  %v455 = vsel %vm452, %v449, %v445
  %v456 = vsel %vm452, %v451, %v447
  %v457 = vsel %vm51, 1, 0
  %v458 = vsel %vm52, 1, 0
  %vm459 = vcmp.eq.s32.totalorder %v457, 1
  %vm460 = vcmp.eq.s32.totalorder %v458, 1
  %v461 = vsel %vm459, %v455, 0.0
  %v462 = vsel %vm460, %v453, 0.0
  %v463 = vsel %vm459, %v456, 0.0
  %v464 = vsel %vm460, %v454, 0.0
  %v465 = vpack.c.bf16 %v461, %v461
  %v466 = vpack.c.bf16 %v462, %v462
  %v467 = vpack.c.bf16 %v463, %v463
  %v468 = vpack.c.bf16 %v464, %v464
  %v469 = vpack.c.bf16 %v62, %v62
  %v471 = vsel %vm121, %v469, 0
  %v474 = vsel %vm125, %v465, 0
  %v477 = vsel %vm125, %v466, 0
  %479 = vmatprep.subr.bf16.mxu0 %v477
  %480 = vmatpush1.bf16.msra.mxu0 %v474
  %481 = vmatprep.subr.bf16.mxu0 0
  %482 = vmatpush1.bf16.msra.mxu0 0
  %483 = vmatprep.subr.bf16.mxu0 0
  %484 = vmatpush1.bf16.msra.mxu0 0
  %485 = vmatprep.subr.bf16.mxu0 0
  %486 = vmatpush1.bf16.msra.mxu0 0
  %487 = vmatprep.subr.bf16.mxu0 0
  %488 = vmatpush1.bf16.msra.mxu0 0
  %489 = vmatprep.subr.bf16.mxu0 0
  %490 = vmatpush1.bf16.msra.mxu0 0
  %491 = vmatprep.subr.bf16.mxu0 0
  %492 = vmatpush1.bf16.msra.mxu0 0
  %493 = vmatprep.subr.bf16.mxu0 0
  %494 = vmatpush1.bf16.msra.mxu0 0
  %495 = vmatprep.subr.bf16.mxu0 0
  %496 = vmatpush1.bf16.msra.mxu0 0
  %497 = vmatprep.subr.bf16.mxu0 0
  %498 = vmatpush1.bf16.msra.mxu0 0
  %499 = vmatprep.subr.bf16.mxu0 0
  %500 = vmatpush1.bf16.msra.mxu0 0
  %501 = vmatprep.subr.bf16.mxu0 0
  %502 = vmatpush1.bf16.msra.mxu0 0
  %503 = vmatprep.subr.bf16.mxu0 0
  %504 = vmatpush1.bf16.msra.mxu0 0
  %505 = vmatprep.subr.bf16.mxu0 0
  %506 = vmatpush1.bf16.msra.mxu0 0
  %507 = vmatprep.subr.bf16.mxu0 0
  %508 = vmatpush1.bf16.msra.mxu0 0
  %509 = vmatprep.subr.bf16.mxu0 0
  %510 = vmatpush1.bf16.msra.mxu0 0
  %511 = vmatprep.mubr.bf16.mxu0 0
  %512 = vmatmul.mubr.bf16.gmra.mrb[0].mxu0 %v471
  %v513 = vpop.f32.mrb[0].mxu0
  %v514 = vadd.f32 0.0, %v513
  %v515 = vpop.f32.mrb[0].mxu0
  %v516 = vadd.f32 0.0, %v515
  %v517 = vpop.f32.mrb[0].mxu0
  %v518 = vpop.f32.mrb[0].mxu0
  %519 = vdwg.mxu0
  %v521 = vsel %vm125, %v467, 0
  %v524 = vsel %vm125, %v468, 0
  %526 = vmatprep.subr.bf16.mxu0 %v524
  %527 = vmatpush1.bf16.msra.mxu0 %v521
  %528 = vmatprep.subr.bf16.mxu0 0
  %529 = vmatpush1.bf16.msra.mxu0 0
  %530 = vmatprep.subr.bf16.mxu0 0
  %531 = vmatpush1.bf16.msra.mxu0 0
  %532 = vmatprep.subr.bf16.mxu0 0
  %533 = vmatpush1.bf16.msra.mxu0 0
  %534 = vmatprep.subr.bf16.mxu0 0
  %535 = vmatpush1.bf16.msra.mxu0 0
  %536 = vmatprep.subr.bf16.mxu0 0
  %537 = vmatpush1.bf16.msra.mxu0 0
  %538 = vmatprep.subr.bf16.mxu0 0
  %539 = vmatpush1.bf16.msra.mxu0 0
  %540 = vmatprep.subr.bf16.mxu0 0
  %541 = vmatpush1.bf16.msra.mxu0 0
  %542 = vmatprep.subr.bf16.mxu0 0
  %543 = vmatpush1.bf16.msra.mxu0 0
  %544 = vmatprep.subr.bf16.mxu0 0
  %545 = vmatpush1.bf16.msra.mxu0 0
  %546 = vmatprep.subr.bf16.mxu0 0
  %547 = vmatpush1.bf16.msra.mxu0 0
  %548 = vmatprep.subr.bf16.mxu0 0
  %549 = vmatpush1.bf16.msra.mxu0 0
  %550 = vmatprep.subr.bf16.mxu0 0
  %551 = vmatpush1.bf16.msra.mxu0 0
  %552 = vmatprep.subr.bf16.mxu0 0
  %553 = vmatpush1.bf16.msra.mxu0 0
  %554 = vmatprep.subr.bf16.mxu0 0
  %555 = vmatpush1.bf16.msra.mxu0 0
  %556 = vmatprep.subr.bf16.mxu0 0
  %557 = vmatpush1.bf16.msra.mxu0 0
  %558 = vmatprep.mubr.bf16.mxu0 0
  %559 = vmatmul.mubr.bf16.gmra.mrb[0].mxu0 %v471
  %v560 = vpop.f32.mrb[0].mxu0
  %v561 = vadd.f32 0.0, %v560
  %v562 = vpop.f32.mrb[0].mxu0
  %v563 = vadd.f32 0.0, %v562
  %v564 = vpop.f32.mrb[0].mxu0
  %v565 = vpop.f32.mrb[0].mxu0
  %566 = vdwg.mxu0
  %v567 = vadd.f32 %v440, %v514
  %v568 = vadd.f32 %v441, %v516
  %v569 = vadd.f32 %v442, %v561
  %v570 = vadd.f32 %v443, %v563
  %v571 = vld [vmem:[%s3] sm:$0xff]
  %573 = vset.pattern.permute.xlu0 0
  %574 = vperm.xlu0 %573, %v571
  %v575 = vpop.permute.xlu0 %574
  %v577 = vadd.f32 %v567, %v575
  %v578 = vadd.f32 %v568, %v575
  %v579 = vadd.f32 %v569, %v575
  %v580 = vadd.f32 %v570, %v575
  %v581 = vadd.f32 %v577, 2.0
  %v582 = vadd.f32 %v578, 2.0
  %v583 = vadd.f32 %v579, 2.0
  %v584 = vadd.f32 %v580, 2.0
  %v585 = vxor.u32 %v581, 2147483648
  %v586 = vxor.u32 %v582, 2147483648
  %v587 = vxor.u32 %v583, 2147483648
  %v588 = vxor.u32 %v584, 2147483648
  %v589 = vmul.f32 %v585, 1.442695
  %v590 = vpow.pop %v589
  %v591 = vmul.f32 %v586, 1.442695
  %v592 = vpow.pop %v591
  %v593 = vmul.f32 %v587, 1.442695
  %v594 = vpow.pop %v593
  %v595 = vmul.f32 %v588, 1.442695
  %v596 = vpow.pop %v595
  %v597 = vadd.f32 %v590, 1.0
  %v598 = vadd.f32 %v592, 1.0
  %v599 = vadd.f32 %v594, 1.0
  %v600 = vadd.f32 %v596, 1.0
  %v601 = vrcp.pop %v597
  %v602 = vmul.f32 1.0, %v601
  %v603 = vrcp.pop %v598
  %v604 = vmul.f32 1.0, %v603
  %v605 = vrcp.pop %v599
  %v606 = vmul.f32 1.0, %v605
  %v607 = vrcp.pop %v600
  %v608 = vmul.f32 1.0, %v607
  %v609 = vcombine.low %v20, %v20
  %v610 = vcombine.low %v21, %v21
  %v613 = vmul.f32 %v602, %v609
  %v614 = vmul.f32 %v604, %v20
  %v615 = vmul.f32 %v606, %v610
  %v616 = vmul.f32 %v608, %v21
  %v621 = vrot.slane %v577, 4
  %v622 = vrot.slane %v578, 4
  %v623 = vrot.slane %v579, 4
  %v624 = vrot.slane %v580, 4
  %v629 = vadd.f32 %v613, %v621
  %v630 = vadd.f32 %v614, %v622
  %v631 = vadd.f32 %v615, %v623
  %v632 = vadd.f32 %v616, %v624
  %v637 = vcombine.high %v629, %v630
  %v638 = vcombine.high %v631, %v632
  %641 = vst [vmem:[%s4] sm:$0xff] %v637
  %642 = vst [vmem:[%s4 + $0x8] sm:$0xff] %v638
  %v643 = vld [vmem:[%s1] sm:$0xff]
  %v644 = vld [vmem:[%s1 + $0x8] sm:$0xff]
  %v647 = vcombine.low %v643, %v643
  %v648 = vcombine.low %v644, %v644
  %v651 = vmul.f32 %v602, %v647
  %v652 = vmul.f32 %v604, %v643
  %v653 = vmul.f32 %v606, %v648
  %v654 = vmul.f32 %v608, %v644
  %v655 = vadd.f32 %v651, %v621
  %v656 = vadd.f32 %v652, %v622
  %v657 = vadd.f32 %v653, %v623
  %v658 = vadd.f32 %v654, %v624
  %v663 = vcombine.high %v655, %v656
  %v664 = vcombine.high %v657, %v658
  %667 = vst [vmem:[%s5] sm:$0xff] %v663
  %668 = vst [vmem:[%s5 + $0x8] sm:$0xff] %v664
  // Predicated region
  $region18: #{autoregressive_subset_transform_2d.1} parent=0 // pred_check
    _
  $region19: #{autoregressive_subset_transform_2d.1} parent=0 // pred_check_branch
    %670 = sbr.rel (0) target = $region21
  $region20: #{autoregressive_subset_transform_2d.1} parent=0 // pred_region
    _
  $region21: #{autoregressive_subset_transform_2d.1} parent=0 // pred_fallthru
    _
  // Predicated region
  $region22: #{autoregressive_subset_transform_2d.1} parent=0 // pred_check
    _
  $region23: #{autoregressive_subset_transform_2d.1} parent=0 // pred_check_branch
    %672 = sbr.rel (0) target = $region25
  $region24: #{autoregressive_subset_transform_2d.1} parent=0 // pred_region
    _
  $region25: #{autoregressive_subset_transform_2d.1} parent=0 // pred_fallthru
    _
  // Predicated region
  $region26: #{autoregressive_subset_transform_2d.1} parent=0 // pred_check
    _
  $region27: #{autoregressive_subset_transform_2d.1} parent=0 // pred_check_branch
    %674 = sbr.rel (0) target = $region29
  $region28: #{autoregressive_subset_transform_2d.1} parent=0 // pred_region
    _
  $region29: #{autoregressive_subset_transform_2d.1} parent=0 // pred_fallthru
    _
  // Predicated region
  $region30: #{autoregressive_subset_transform_2d.1} parent=0 // pred_check
    _
  $region31: #{autoregressive_subset_transform_2d.1} parent=0 // pred_check_branch
    %676 = sbr.rel (0) target = $region33
  $region32: #{autoregressive_subset_transform_2d.1} parent=0 // pred_region
    _
  $region33: #{autoregressive_subset_transform_2d.1} parent=0 // pred_fallthru
    _

</llo_original>
